<compile_context>
chip_gen: v6e
topology: v6e:2x2x1
jax: 0.10.0
libtpu: 0.0.40
codegen_flags: <defaults>
</compile_context>

<pallas_src>
import math

import jax
import jax.numpy as jnp
from jax.experimental import pallas as pl
from jax.experimental.pallas import tpu as pltpu


# ----------------------------------------------------------------------------
# Fused kernel: gcn1 + ReLU + gcn2 for one graph of the batch; all
# intermediates stay in VMEM/vregs.
# ----------------------------------------------------------------------------
def gcn_backup_kernel(adj_ref, feat_ref, w1_ref, w2_ref, bias_ref, out_ref):
    adj = adj_ref[0]                     # [N, N]
    feat = feat_ref[0]                   # [N, I]
    w1 = w1_ref[...]                     # [I, H]
    w2 = w2_ref[...]                     # [H, O]

    I = feat.shape[1]
    H = w1.shape[1]
    O = w2.shape[1]
    b1 = bias_ref[:, :H]                 # [1, H]
    b2 = bias_ref[:, H:H + O]            # [1, O]

    # ---- gcn1: linear(adj @ features) + ReLU (association chosen statically)
    if I <= H:
        # (adj @ feat) @ W1 : N*N*I + N*I*H  (cheaper while I <= H)
        h = jnp.dot(
            jnp.dot(adj, feat, preferred_element_type=jnp.float32),
            w1, preferred_element_type=jnp.float32)
    else:
        # adj @ (feat @ W1) : N*I*H + N*N*H
        h = jnp.dot(
            adj, jnp.dot(feat, w1, preferred_element_type=jnp.float32),
            preferred_element_type=jnp.float32)
    h = jnp.maximum(h + b1, 0.0)         # [N, H]

    # ---- gcn2: linear(adj @ h) == adj @ (h @ W2) + b2 (bias is outside adj)
    if O < H:
        out = jnp.dot(
            adj, jnp.dot(h, w2, preferred_element_type=jnp.float32),
            preferred_element_type=jnp.float32)
    else:
        out = jnp.dot(
            jnp.dot(adj, h, preferred_element_type=jnp.float32),
            w2, preferred_element_type=jnp.float32)
    out_ref[0] = out + b2                # [N, O]


# ----------------------------------------------------------------------------
# Wrapper: batched over a leading (parallel) grid axis.
# ----------------------------------------------------------------------------
def gcn_backup_forward(params, adj, features):
    B, N, _ = adj.shape
    I = features.shape[-1]
    H = params["w1"].shape[1]
    O = params["w2"].shape[1]

    # Pack the two biases into a single small operand (fewer DMA descriptors).
    bias = jnp.concatenate([params["b1"], params["b2"]], axis=1)  # [1, H+O]

    # Advisory cost estimate (matches the association chosen in the kernel).
    flops_l1 = 2 * N * N * I + 2 * N * I * H if I <= H else 2 * N * I * H + 2 * N * N * H
    flops_l2 = 2 * N * H * O + 2 * N * N * O if O < H else 2 * N * N * H + 2 * N * H * O
    flops = B * (flops_l1 + flops_l2)
    bytes_accessed = 4 * (B * (N * N + N * I + N * O) + I * H + H * O + (H + O))

    return pl.pallas_call(
        gcn_backup_kernel,
        grid_spec=pltpu.PrefetchScalarGridSpec(
            num_scalar_prefetch=0,
            grid=(B,),
            in_specs=[
                pl.BlockSpec((1, N, N), lambda b: (b, 0, 0)),   # adj
                pl.BlockSpec((1, N, I), lambda b: (b, 0, 0)),   # features
                pl.BlockSpec((I, H), lambda b: (0, 0)),          # w1 (resident)
                pl.BlockSpec((H, O), lambda b: (0, 0)),          # w2 (resident)
                pl.BlockSpec((1, H + O), lambda b: (0, 0)),      # packed biases
            ],
            out_specs=pl.BlockSpec((1, N, O), lambda b: (b, 0, 0)),
        ),
        out_shape=jax.ShapeDtypeStruct((B, N, O), jnp.float32),
        compiler_params=pltpu.CompilerParams(
            dimension_semantics=("parallel",),
            vmem_limit_bytes=64 * 1024 * 1024,
        ),
        cost_estimate=pl.CostEstimate(
            flops=flops, transcendentals=0, bytes_accessed=bytes_accessed),
    )(adj, features, params["w1"], params["w2"], bias)


# ----------------------------------------------------------------------------
# Deterministic parameter init (PyTorch nn.Linear-style uniform bounds),
# weights stored as [in_features, out_features].
# ----------------------------------------------------------------------------
def init_params(key, input_size, hidden_size, output_size):
    ks = jax.random.split(key, 4)

    def uni(k, shape, fan_in):
        bound = 1.0 / math.sqrt(fan_in)
        return jax.random.uniform(k, shape, jnp.float32, -bound, bound)

    return {
        "w1": uni(ks[0], (input_size, hidden_size), input_size),
        "b1": uni(ks[1], (1, hidden_size), input_size),
        "w2": uni(ks[2], (hidden_size, output_size), hidden_size),
        "b2": uni(ks[3], (1, output_size), hidden_size),
    }


def reference_forward(params, adj, features):
    # Batched reference (jnp.matmul broadcasts over the leading batch axis).
    h = jnp.maximum(adj @ features @ params["w1"] + params["b1"], 0.0)
    return adj @ h @ params["w2"] + params["b2"]


# ----------------------------------------------------------------------------
if __name__ == "__main__":
    # Small shapes consistent with the module (input_size == output_size == N):
    #   B = 4 graphs, N = 16 nodes, input = 16, hidden = 32, output = 16.
    B, N, INPUT, HIDDEN, OUTPUT = 4, 16, 16, 32, 16

    key = jax.random.PRNGKey(0)
    k_adj, k_feat, k_par = jax.random.split(key, 3)

    adj = jax.random.uniform(k_adj, (B, N, N), jnp.float32)
    features = jax.random.normal(k_feat, (B, N, INPUT), jnp.float32)
    params = init_params(k_par, INPUT, HIDDEN, OUTPUT)

    out = gcn_backup_forward(params, adj, features)
    out = jax.block_until_ready(out)

    ref = jax.block_until_ready(reference_forward(params, adj, features))
    assert out.shape == (B, N, OUTPUT)
    assert jnp.allclose(out, ref, rtol=1e-4, atol=1e-4)

    print("KERNEL_OK")
</pallas_src>

<mosaic_0001>
module attributes {stable_mosaic.version = 11 : i64} {
  func.func @gcn_backup_kernel(%arg0: i32, %arg1: memref<1x16x16xf32, #tpu.memory_space<vmem>>, %arg2: memref<1x16x16xf32, #tpu.memory_space<vmem>>, %arg3: memref<16x32xf32, #tpu.memory_space<vmem>>, %arg4: memref<32x16xf32, #tpu.memory_space<vmem>>, %arg5: memref<1x48xf32, #tpu.memory_space<vmem>>, %arg6: memref<1x16x16xf32, #tpu.memory_space<vmem>>) attributes {dimension_semantics = [#tpu.dimension_semantics<parallel>], iteration_bounds = array<i64: 4>, scalar_prefetch = 0 : i64, scratch_operands = 0 : i64, tpu.core_type = #tpu.core_type<tc>, window_params = [{transform_indices = @transform_0, window_bounds = array<i64: 1, 16, 16>}, {transform_indices = @transform_1, window_bounds = array<i64: 1, 16, 16>}, {pipeline_mode = #tpu.pipeline_mode<synchronous>, transform_indices = @transform_2, window_bounds = array<i64: 16, 32>}, {pipeline_mode = #tpu.pipeline_mode<synchronous>, transform_indices = @transform_3, window_bounds = array<i64: 32, 16>}, {pipeline_mode = #tpu.pipeline_mode<synchronous>, transform_indices = @transform_4, window_bounds = array<i64: 1, 48>}, {transform_indices = @transform_5, window_bounds = array<i64: 1, 16, 16>}]} {
    %c0 = arith.constant 0 : index
    %c0_0 = arith.constant 0 : index
    %c0_1 = arith.constant 0 : index
    %0 = vector.load %arg1[%c0, %c0_0, %c0_1] : memref<1x16x16xf32, #tpu.memory_space<vmem>>, vector<1x16x16xf32>
    %1 = vector.shape_cast %0 : vector<1x16x16xf32> to vector<16x16xf32>
    %c0_2 = arith.constant 0 : index
    %c0_3 = arith.constant 0 : index
    %c0_4 = arith.constant 0 : index
    %2 = vector.load %arg2[%c0_2, %c0_3, %c0_4] : memref<1x16x16xf32, #tpu.memory_space<vmem>>, vector<1x16x16xf32>
    %3 = vector.shape_cast %2 : vector<1x16x16xf32> to vector<16x16xf32>
    %c0_5 = arith.constant 0 : index
    %c0_6 = arith.constant 0 : index
    %4 = vector.load %arg3[%c0_5, %c0_6] : memref<16x32xf32, #tpu.memory_space<vmem>>, vector<16x32xf32>
    %c0_7 = arith.constant 0 : index
    %c0_8 = arith.constant 0 : index
    %5 = vector.load %arg4[%c0_7, %c0_8] : memref<32x16xf32, #tpu.memory_space<vmem>>, vector<32x16xf32>
    %c0_9 = arith.constant 0 : index
    %c0_10 = arith.constant 0 : index
    %6 = vector.load %arg5[%c0_9, %c0_10] : memref<1x48xf32, #tpu.memory_space<vmem>>, vector<1x32xf32>
    %c0_11 = arith.constant 0 : index
    %c32 = arith.constant 32 : index
    %7 = vector.load %arg5[%c0_11, %c32] : memref<1x48xf32, #tpu.memory_space<vmem>>, vector<1x16xf32>
    %cst = arith.constant dense<0.000000e+00> : vector<16x16xf32>
    %8 = tpu.matmul %1, %3, %cst {dimension_numbers = #tpu.dot_dimension_numbers<[1], [0], [0], [1], [0, 0, 1, 1], [], []>} : vector<16x16xf32>, vector<16x16xf32>, vector<16x16xf32> -> vector<16x16xf32>
    %cst_12 = arith.constant dense<0.000000e+00> : vector<16x32xf32>
    %9 = tpu.matmul %8, %4, %cst_12 {dimension_numbers = #tpu.dot_dimension_numbers<[1], [0], [0], [1], [0, 0, 1, 1], [], []>} : vector<16x16xf32>, vector<16x32xf32>, vector<16x32xf32> -> vector<16x32xf32>
    %10 = vector.broadcast %6 : vector<1x32xf32> to vector<16x32xf32>
    %11 = arith.addf %9, %10 : vector<16x32xf32>
    %cst_13 = arith.constant 0.000000e+00 : f32
    %12 = vector.broadcast %cst_13 : f32 to vector<16x32xf32>
    %13 = arith.maximumf %11, %12 : vector<16x32xf32>
    %cst_14 = arith.constant dense<0.000000e+00> : vector<16x16xf32>
    %14 = tpu.matmul %13, %5, %cst_14 {dimension_numbers = #tpu.dot_dimension_numbers<[1], [0], [0], [1], [0, 0, 1, 1], [], []>} : vector<16x32xf32>, vector<32x16xf32>, vector<16x16xf32> -> vector<16x16xf32>
    %cst_15 = arith.constant dense<0.000000e+00> : vector<16x16xf32>
    %15 = tpu.matmul %1, %14, %cst_15 {dimension_numbers = #tpu.dot_dimension_numbers<[1], [0], [0], [1], [0, 0, 1, 1], [], []>} : vector<16x16xf32>, vector<16x16xf32>, vector<16x16xf32> -> vector<16x16xf32>
    %16 = vector.broadcast %7 : vector<1x16xf32> to vector<16x16xf32>
    %17 = arith.addf %15, %16 : vector<16x16xf32>
    %c0_16 = arith.constant 0 : index
    %c0_17 = arith.constant 0 : index
    %c0_18 = arith.constant 0 : index
    %18 = vector.load %arg6[%c0_16, %c0_17, %c0_18] : memref<1x16x16xf32, #tpu.memory_space<vmem>>, vector<1x16x16xf32>
    %19 = vector.shape_cast %18 : vector<1x16x16xf32> to vector<16x16xf32>
    %20 = vector.shape_cast %17 : vector<16x16xf32> to vector<1x16x16xf32>
    tpu.vector_store %arg6[%c0_16, %c0_17, %c0_18], %20 {strides = array<i32>} : memref<1x16x16xf32, #tpu.memory_space<vmem>>, vector<1x16x16xf32>,
    return
  }
  func.func @transform_0(%arg0: i32) -> (i32, i32, i32) {
    %c0_i32 = arith.constant 0 : i32
    %c0_i32_0 = arith.constant 0 : i32
    %c0_i32_1 = arith.constant 0 : i32
    return %arg0, %c0_i32, %c0_i32_0 : i32, i32, i32
  }
  func.func @transform_1(%arg0: i32) -> (i32, i32, i32) {
    %c0_i32 = arith.constant 0 : i32
    %c0_i32_0 = arith.constant 0 : i32
    %c0_i32_1 = arith.constant 0 : i32
    return %arg0, %c0_i32, %c0_i32_0 : i32, i32, i32
  }
  func.func @transform_2(%arg0: i32) -> (i32, i32) {
    %c0_i32 = arith.constant 0 : i32
    %c0_i32_0 = arith.constant 0 : i32
    %c0_i32_1 = arith.constant 0 : i32
    return %c0_i32, %c0_i32_0 : i32, i32
  }
  func.func @transform_3(%arg0: i32) -> (i32, i32) {
    %c0_i32 = arith.constant 0 : i32
    %c0_i32_0 = arith.constant 0 : i32
    %c0_i32_1 = arith.constant 0 : i32
    return %c0_i32, %c0_i32_0 : i32, i32
  }
  func.func @transform_4(%arg0: i32) -> (i32, i32) {
    %c0_i32 = arith.constant 0 : i32
    %c0_i32_0 = arith.constant 0 : i32
    %c0_i32_1 = arith.constant 0 : i32
    return %c0_i32, %c0_i32_0 : i32, i32
  }
  func.func @transform_5(%arg0: i32) -> (i32, i32, i32) {
    %c0_i32 = arith.constant 0 : i32
    %c0_i32_0 = arith.constant 0 : i32
    %c0_i32_1 = arith.constant 0 : i32
    return %arg0, %c0_i32, %c0_i32_0 : i32, i32, i32
  }
}

</mosaic_0001>

<llo_original>
// kernel: tpu_custom_call.1
$region0: #{tpu_custom_call.1}
  #allocation0 [shape = 'u32[]', space=smem, size = 0x4, offset = 0x4, fixed_abs, tag = 'smem constant byte address 0x4 - core index']
  #allocation1 [shape = 'u32[144,128]{1,0:T(1,128)}', space=vmem, size = 0x12000, scoped, tag = 'internal scratch']
  %s0 = inlined_call_operand.hbm [shape: f32[4,16,16], index: 0, kind: input, shape index: {}]
  %s1 = inlined_call_operand.hbm [shape: f32[4,16,16], index: 1, kind: input, shape index: {}]
  %s2 = inlined_call_operand.vmem [shape: f32[16,32], index: 2, kind: input, shape index: {}]
  %s3 = inlined_call_operand.vmem [shape: f32[32,16], index: 3, kind: input, shape index: {}]
  %s4 = inlined_call_operand.vmem [shape: f32[1,48], index: 4, kind: input, shape index: {}]
  %s5 = inlined_call_operand.hbm [shape: f32[4,16,16], index: 5, kind: output, shape index: {}]
  %s6 = sld [smem:[#allocation0]]
  $region61: #{tpu_custom_call.1} parent=0
    _
  %s8 = ssub.s32 1, %s6
  %s9 = scalar_select 0, %s8, %s6
  $region1: #{tpu_custom_call.1} parent=0
    #allocation2 [shape = 'u8[16384]{0}', space=vmem, size = 0x4000, scoped, tag = 'input window, operand 0']
    #allocation3 [shape = 's32[2]{0}', space=sflag, size = 0x8, scoped, tag = 'scoped memory for tpu_custom_call.1']
    #allocation4 [shape = 's32[2]{0}', space=sflag, size = 0x8, scoped, tag = 'scoped memory for tpu_custom_call.1']
    #allocation5 [shape = 'u8[16384]{0}', space=vmem, size = 0x4000, scoped, tag = 'input window, operand 1']
    #allocation6 [shape = 's32[2]{0}', space=sflag, size = 0x8, scoped, tag = 'scoped memory for tpu_custom_call.1']
    #allocation7 [shape = 'u8[16384]{0}', space=vmem, size = 0x4000, scoped, tag = 'output window, operand 0']
    %10 = vsyncpa [#allocation3], 0
    %s11 = scalar_lea.sflag [#allocation3], 1
    %12 = vsyncpa %s11, 0
    %13 = vsyncpa [#allocation6], 0
    %s14 = scalar_lea.sflag [#allocation6], 1
    %15 = vsyncpa %s14, 0
    %16 = vsyncpa [#allocation4], 0
    %s17 = scalar_lea.sflag [#allocation4], 1
    %18 = vsyncpa %s17, 0
    loop: start=0, step=1, limit=6
    $region2: #{tpu_custom_call.1} parent=1 // loop_pre_header
      _
    $region3: #{tpu_custom_call.1} parent=1 // loop_header
      %s20 = sphi 0, %s24
      %p21 = scmp.ge.s32.totalorder %s20, 6
      %s30 = sphi 0, %s32
      %s33 = sphi 0, %s30
      %s34 = sphi 0, %s33
      %s50 = sphi 0, %s34
      %s56 = sphi 0, %s58
      %s59 = sphi 0, %s56
      %s60 = sphi 0, %s59
      %s76 = sphi 0, %s60
      %s80 = sphi 0, %s80
      %s82 = sphi 0, %s80
      %s83 = sphi 0, %s82
      %s97 = sphi 0, %s83
      %s101 = sphi 0, %s101
      %s103 = sphi 0, %s101
      %s104 = sphi 0, %s103
      %s118 = sphi 0, %s104
      %s122 = sphi 0, %s122
      %s124 = sphi 0, %s122
      %s125 = sphi 0, %s124
      %s139 = sphi 0, %s125
      %s145 = sphi 0, %s147
      %s148 = sphi 0, %s145
      %s149 = sphi 0, %s148
      %s165 = sphi 0, %s149
    $region4: #{tpu_custom_call.1} parent=1 // loop_header_branch
      %23 = sbr.rel (%p21) target = $region8
    $region5: #{tpu_custom_call.1} parent=1 // loop_body
      %s25 = ssub.s32 %s20, 1
      %s26 = ssub.s32 %s20, 2
      %s27 = sadd.s32 %s20, 1
      %s28 = ssub.s32 %s20, %s27
      %p29 = scmp.eq.s32.totalorder %s28, 0
      %s31 = sadd.s32 %s30, 1
      %s32 = scalar_select %p29, %s30, %s31
      %p35 = pneg %p29
      %p36 = scmp.eq.s32.totalorder %s20, 3
      %p37 = por %p35, %p36
      %p38 = scmp.ne.s32.totalorder %s30, %s33
      %p39 = scmp.eq.s32.totalorder %s20, 0
      %p40 = por %p38, %p39
      %p41 = scmp.ne.s32.totalorder %s30, %s33
      %p42 = scmp.eq.s32.totalorder %s25, 3
      %p43 = por %p41, %p42
      %p44 = scmp.ne.s32.totalorder %s33, %s34
      %p45 = scmp.eq.s32.totalorder %s25, 0
      %p46 = por %p44, %p45
      %p47 = scmp.ne.s32.totalorder %s33, %s34
      %p48 = scmp.eq.s32.totalorder %s26, 3
      %p49 = por %p47, %p48
      %p51 = scmp.ne.s32.totalorder %s34, %s50
      %p52 = scmp.eq.s32.totalorder %s26, 0
      %p53 = por %p51, %p52
      %s54 = ssub.s32 %s20, %s27
      %p55 = scmp.eq.s32.totalorder %s54, 0
      %s57 = sadd.s32 %s56, 1
      %s58 = scalar_select %p55, %s56, %s57
      %p61 = pneg %p55
      %p62 = scmp.eq.s32.totalorder %s20, 3
      %p63 = por %p61, %p62
      %p64 = scmp.ne.s32.totalorder %s56, %s59
      %p65 = scmp.eq.s32.totalorder %s20, 0
      %p66 = por %p64, %p65
      %p67 = scmp.ne.s32.totalorder %s56, %s59
      %p68 = scmp.eq.s32.totalorder %s25, 3
      %p69 = por %p67, %p68
      %p70 = scmp.ne.s32.totalorder %s59, %s60
      %p71 = scmp.eq.s32.totalorder %s25, 0
      %p72 = por %p70, %p71
      %p73 = scmp.ne.s32.totalorder %s59, %s60
      %p74 = scmp.eq.s32.totalorder %s26, 3
      %p75 = por %p73, %p74
      %p77 = scmp.ne.s32.totalorder %s60, %s76
      %p78 = scmp.eq.s32.totalorder %s26, 0
      %p79 = por %p77, %p78
      %s81 = sadd.s32 %s80, 1
      %p84 = scmp.eq.s32.totalorder %s20, 3
      %p85 = scmp.ne.s32.totalorder %s80, %s82
      %p86 = scmp.eq.s32.totalorder %s20, 0
      %p87 = por %p85, %p86
      %p88 = scmp.ne.s32.totalorder %s80, %s82
      %p89 = scmp.eq.s32.totalorder %s25, 3
      %p90 = por %p88, %p89
      %p91 = scmp.ne.s32.totalorder %s82, %s83
      %p92 = scmp.eq.s32.totalorder %s25, 0
      %p93 = por %p91, %p92
      %p94 = scmp.ne.s32.totalorder %s82, %s83
      %p95 = scmp.eq.s32.totalorder %s26, 3
      %p96 = por %p94, %p95
      %p98 = scmp.ne.s32.totalorder %s83, %s97
      %p99 = scmp.eq.s32.totalorder %s26, 0
      %p100 = por %p98, %p99
      %s102 = sadd.s32 %s101, 1
      %p105 = scmp.eq.s32.totalorder %s20, 3
      %p106 = scmp.ne.s32.totalorder %s101, %s103
      %p107 = scmp.eq.s32.totalorder %s20, 0
      %p108 = por %p106, %p107
      %p109 = scmp.ne.s32.totalorder %s101, %s103
      %p110 = scmp.eq.s32.totalorder %s25, 3
      %p111 = por %p109, %p110
      %p112 = scmp.ne.s32.totalorder %s103, %s104
      %p113 = scmp.eq.s32.totalorder %s25, 0
      %p114 = por %p112, %p113
      %p115 = scmp.ne.s32.totalorder %s103, %s104
      %p116 = scmp.eq.s32.totalorder %s26, 3
      %p117 = por %p115, %p116
      %p119 = scmp.ne.s32.totalorder %s104, %s118
      %p120 = scmp.eq.s32.totalorder %s26, 0
      %p121 = por %p119, %p120
      %s123 = sadd.s32 %s122, 1
      %p126 = scmp.eq.s32.totalorder %s20, 3
      %p127 = scmp.ne.s32.totalorder %s122, %s124
      %p128 = scmp.eq.s32.totalorder %s20, 0
      %p129 = por %p127, %p128
      %p130 = scmp.ne.s32.totalorder %s122, %s124
      %p131 = scmp.eq.s32.totalorder %s25, 3
      %p132 = por %p130, %p131
      %p133 = scmp.ne.s32.totalorder %s124, %s125
      %p134 = scmp.eq.s32.totalorder %s25, 0
      %p135 = por %p133, %p134
      %p136 = scmp.ne.s32.totalorder %s124, %s125
      %p137 = scmp.eq.s32.totalorder %s26, 3
      %p138 = por %p136, %p137
      %p140 = scmp.ne.s32.totalorder %s125, %s139
      %p141 = scmp.eq.s32.totalorder %s26, 0
      %p142 = por %p140, %p141
      %s143 = ssub.s32 %s20, %s27
      %p144 = scmp.eq.s32.totalorder %s143, 0
      %s146 = sadd.s32 %s145, 1
      %s147 = scalar_select %p144, %s145, %s146
      %p150 = pneg %p144
      %p151 = scmp.eq.s32.totalorder %s20, 3
      %p152 = por %p150, %p151
      %p153 = scmp.ne.s32.totalorder %s145, %s148
      %p154 = scmp.eq.s32.totalorder %s20, 0
      %p155 = por %p153, %p154
      %p156 = scmp.ne.s32.totalorder %s145, %s148
      %p157 = scmp.eq.s32.totalorder %s25, 3
      %p158 = por %p156, %p157
      %p159 = scmp.ne.s32.totalorder %s148, %s149
      %p160 = scmp.eq.s32.totalorder %s25, 0
      %p161 = por %p159, %p160
      %p162 = scmp.ne.s32.totalorder %s148, %s149
      %p163 = scmp.eq.s32.totalorder %s26, 3
      %p164 = por %p162, %p163
      %p166 = scmp.ne.s32.totalorder %s149, %s165
      %p167 = scmp.eq.s32.totalorder %s26, 0
      %p168 = por %p166, %p167
      %p169 = scmp.le.s32.totalorder 1, %s20
      %p170 = scmp.lt.s32.totalorder %s20, 5
      %p171 = pnand %p169, %p170
      %p172 = pneg %p171
      // Predicated region
      $region9: #{tpu_custom_call.1} parent=5 // pred_check
        _
      $region10: #{tpu_custom_call.1} parent=5 // pred_check_branch
        %174 = sbr.rel (%p171) target = $region12
      $region11: #{tpu_custom_call.1} parent=5 // pred_region
        %s175 = ssub.s32 %s20, 1
        // Predicated region
        $region13: #{tpu_custom_call.1} parent=11 // pred_check
          %p176 = pneg %p93
        $region14: #{tpu_custom_call.1} parent=11 // pred_check_branch
          %178 = sbr.rel (%p176) target = $region16
        $region15: #{tpu_custom_call.1} parent=11 // pred_region
          _
        $region16: #{tpu_custom_call.1} parent=11 // pred_fallthru
          _
        // Predicated region
        $region17: #{tpu_custom_call.1} parent=11 // pred_check
          %p179 = pneg %p114
        $region18: #{tpu_custom_call.1} parent=11 // pred_check_branch
          %181 = sbr.rel (%p179) target = $region20
        $region19: #{tpu_custom_call.1} parent=11 // pred_region
          _
        $region20: #{tpu_custom_call.1} parent=11 // pred_fallthru
          _
        // Predicated region
        $region21: #{tpu_custom_call.1} parent=11 // pred_check
          %p182 = pneg %p135
        $region22: #{tpu_custom_call.1} parent=11 // pred_check_branch
          %184 = sbr.rel (%p182) target = $region24
        $region23: #{tpu_custom_call.1} parent=11 // pred_region
          _
        $region24: #{tpu_custom_call.1} parent=11 // pred_fallthru
          _
      $region12: #{tpu_custom_call.1} parent=5 // pred_fallthru
        _
      %p185 = scmp.lt.s32.totalorder %s20, 4
      // Predicated region
      $region25: #{tpu_custom_call.1} parent=5 // pred_check
        %p186 = pneg %p185
      $region26: #{tpu_custom_call.1} parent=5 // pred_check_branch
        %188 = sbr.rel (%p186) target = $region28
      $region27: #{tpu_custom_call.1} parent=5 // pred_region
        // Predicated region
        $region29: #{tpu_custom_call.1} parent=27 // pred_check
          %p189 = pneg %p40
        $region30: #{tpu_custom_call.1} parent=27 // pred_check_branch
          %191 = sbr.rel (%p189) target = $region32
        $region31: #{tpu_custom_call.1} parent=27 // pred_region
          %s192 = sand.u32 %s30, 1
          %s193 = scalar_lea.sflag [#allocation3], %s192
          %s194 = sand.u32 %s30, 1
          %s195 = smul.addr %s194, 16
          %s196 = scalar_lea.vmem [#allocation2], %s195
          %s198 = ssub.s32 256, 256
          %199 = vsyncadd %s193, %s198
          %s200 = smul.addr %s20, 2
          %s201 = smul.addr %s200, 128
          %s202 = scalar_lea.hbm %s0, %s201
          %s203 = sshll.u32 %s196, 4
          %s204 = int_to_ptr.vmem [resolvable:$true] %s203
          %209 = dma.hbm_to_vmem [thread:$0]  %s202, 256, %s204, %s193, 128, 128, 8
        $region32: #{tpu_custom_call.1} parent=27 // pred_fallthru
          _
        // Predicated region
        $region33: #{tpu_custom_call.1} parent=27 // pred_check
          %p210 = pneg %p66
        $region34: #{tpu_custom_call.1} parent=27 // pred_check_branch
          %212 = sbr.rel (%p210) target = $region36
        $region35: #{tpu_custom_call.1} parent=27 // pred_region
          %s213 = sand.u32 %s56, 1
          %s214 = scalar_lea.sflag [#allocation6], %s213
          %s215 = sand.u32 %s56, 1
          %s216 = smul.addr %s215, 16
          %s217 = scalar_lea.vmem [#allocation5], %s216
          %s219 = ssub.s32 256, 256
          %220 = vsyncadd %s214, %s219
          %s221 = smul.addr %s20, 2
          %s222 = smul.addr %s221, 128
          %s223 = scalar_lea.hbm %s1, %s222
          %s224 = sshll.u32 %s217, 4
          %s225 = int_to_ptr.vmem [resolvable:$true] %s224
          %230 = dma.hbm_to_vmem [thread:$0]  %s223, 256, %s225, %s214, 128, 128, 8
        $region36: #{tpu_custom_call.1} parent=27 // pred_fallthru
          _
      $region28: #{tpu_custom_call.1} parent=5 // pred_fallthru
        _
      %p231 = scmp.le.s32.totalorder 1, %s20
      %p232 = scmp.lt.s32.totalorder %s20, 5
      %p233 = pnand %p231, %p232
      %p234 = pneg %p233
      // Predicated region
      $region37: #{tpu_custom_call.1} parent=5 // pred_check
        _
      $region38: #{tpu_custom_call.1} parent=5 // pred_check_branch
        %236 = sbr.rel (%p233) target = $region40
      $region39: #{tpu_custom_call.1} parent=5 // pred_region
        %s237 = ssub.s32 %s20, 1
        %s238 = sand.u32 %s33, 1
        %s239 = scalar_lea.sflag [#allocation3], %s238
        %s240 = sand.u32 %s33, 1
        %s241 = smul.addr %s240, 16
        %s242 = scalar_lea.vmem [#allocation2], %s241
        // Predicated region
        $region41: #{tpu_custom_call.1} parent=39 // pred_check
          %p243 = pneg %p46
        $region42: #{tpu_custom_call.1} parent=39 // pred_check_branch
          %245 = sbr.rel (%p243) target = $region44
        $region43: #{tpu_custom_call.1} parent=39 // pred_region
          %246 = dma.done %s239, 256
        $region44: #{tpu_custom_call.1} parent=39 // pred_fallthru
          _
        %s247 = sand.u32 %s59, 1
        %s248 = scalar_lea.sflag [#allocation6], %s247
        %s249 = sand.u32 %s59, 1
        %s250 = smul.addr %s249, 16
        %s251 = scalar_lea.vmem [#allocation5], %s250
        // Predicated region
        $region45: #{tpu_custom_call.1} parent=39 // pred_check
          %p252 = pneg %p72
        $region46: #{tpu_custom_call.1} parent=39 // pred_check_branch
          %254 = sbr.rel (%p252) target = $region48
        $region47: #{tpu_custom_call.1} parent=39 // pred_region
          %255 = dma.done %s248, 256
        $region48: #{tpu_custom_call.1} parent=39 // pred_fallthru
          _
        %s256 = sand.u32 %s33, 1
        %s257 = scalar_lea.sflag [#allocation3], %s256
        %s258 = sand.u32 %s33, 1
        %s259 = smul.addr %s258, 16
        %s260 = scalar_lea.vmem [#allocation2], %s259
        %p261 = pneg %p46
        %p262 = pneg %p43
        %s263 = sand.u32 %s59, 1
        %s264 = scalar_lea.sflag [#allocation6], %s263
        %s265 = sand.u32 %s59, 1
        %s266 = smul.addr %s265, 16
        %s267 = scalar_lea.vmem [#allocation5], %s266
        %p268 = pneg %p72
        %p269 = pneg %p69
        %p270 = pneg %p93
        %p271 = pneg %p90
        %p272 = pneg %p114
        %p273 = pneg %p111
        %p274 = pneg %p135
        %p275 = pneg %p132
        %p276 = pneg %p161
        %p277 = pneg %p158
        %s278 = sand.u32 %s148, 1
        %s279 = scalar_lea.sflag [#allocation4], %s278
        %s280 = sand.u32 %s148, 1
        %s281 = smul.addr %s280, 16
        %s282 = scalar_lea.vmem [#allocation7], %s281
        %v283 = vld [vmem:[%s242] sm:$0xff]
        %v284 = vld [vmem:[%s242 + $0x8] sm:$0xff]
        %v285 = vld [vmem:[%s251] sm:$0xff]
        %v286 = vld [vmem:[%s251 + $0x8] sm:$0xff]
        %v287 = vld [vmem:[%s2] sm:$0xff]
        %v288 = vld [vmem:[%s2 + $0x8] sm:$0xff]
        %v289 = vld [vmem:[%s3] sm:$0xff]
        %v290 = vld [vmem:[%s3 + $0x8] sm:$0xff]
        %v291 = vld [vmem:[%s3 + $0x10] sm:$0xff]
        %v292 = vld [vmem:[%s3 + $0x18] sm:$0xff]
        %v293 = vld [vmem:[%s4] sm:$0x1]
        %vm294 = vcmask 130048
        %v296 = vsel %vm294, %v283, 0
        %v299 = vsel %vm294, %v284, 0
        %301 = vmatprep.subr.mxu0 0.0
        %302 = vmatpush1.msra.mxu0 0.0
        %303 = vmatprep.subr.mxu0 0.0
        %304 = vmatpush1.msra.mxu0 0.0
        %305 = vmatprep.subr.mxu0 0.0
        %306 = vmatpush1.msra.mxu0 0.0
        %307 = vmatprep.subr.mxu0 0.0
        %308 = vmatpush1.msra.mxu0 0.0
        %309 = vmatprep.subr.mxu0 0.0
        %310 = vmatpush1.msra.mxu0 0.0
        %311 = vmatprep.subr.mxu0 0.0
        %312 = vmatpush1.msra.mxu0 0.0
        %313 = vmatprep.subr.mxu0 0.0
        %314 = vmatpush1.msra.mxu0 0.0
        %315 = vmatprep.subr.mxu0 0.0
        %316 = vmatpush1.msra.mxu0 0.0
        %317 = vmatprep.subr.mxu0 0.0
        %318 = vmatpush1.msra.mxu0 0.0
        %319 = vmatprep.subr.mxu0 0.0
        %320 = vmatpush1.msra.mxu0 0.0
        %321 = vmatprep.subr.mxu0 0.0
        %322 = vmatpush1.msra.mxu0 0.0
        %323 = vmatprep.subr.mxu0 0.0
        %324 = vmatpush1.msra.mxu0 0.0
        %325 = vmatprep.subr.mxu0 0.0
        %326 = vmatpush1.msra.mxu0 0.0
        %327 = vmatprep.subr.mxu0 0.0
        %328 = vmatpush1.msra.mxu0 0.0
        %329 = vmatprep.subr.mxu0 0.0
        %330 = vmatpush1.msra.mxu0 %v286
        %331 = vmatprep.subr.mxu0 0.0
        %332 = vmatpush1.msra.mxu0 %v285
        %333 = vmatprep.subr.mxu0 0.0
        %334 = vmatpush2.msra.mxu0 0.0
        %335 = vmatprep.subr.mxu0 0.0
        %336 = vmatpush2.msra.mxu0 0.0
        %337 = vmatprep.subr.mxu0 0.0
        %338 = vmatpush2.msra.mxu0 0.0
        %339 = vmatprep.subr.mxu0 0.0
        %340 = vmatpush2.msra.mxu0 0.0
        %341 = vmatprep.subr.mxu0 0.0
        %342 = vmatpush2.msra.mxu0 0.0
        %343 = vmatprep.subr.mxu0 0.0
        %344 = vmatpush2.msra.mxu0 0.0
        %345 = vmatprep.subr.mxu0 0.0
        %346 = vmatpush2.msra.mxu0 0.0
        %347 = vmatprep.subr.mxu0 0.0
        %348 = vmatpush2.msra.mxu0 0.0
        %349 = vmatprep.subr.mxu0 0.0
        %350 = vmatpush2.msra.mxu0 0.0
        %351 = vmatprep.subr.mxu0 0.0
        %352 = vmatpush2.msra.mxu0 0.0
        %353 = vmatprep.subr.mxu0 0.0
        %354 = vmatpush2.msra.mxu0 0.0
        %355 = vmatprep.subr.mxu0 0.0
        %356 = vmatpush2.msra.mxu0 0.0
        %357 = vmatprep.subr.mxu0 0.0
        %358 = vmatpush2.msra.mxu0 0.0
        %359 = vmatprep.subr.mxu0 0.0
        %360 = vmatpush2.msra.mxu0 0.0
        %361 = vmatprep.subr.mxu0 0.0
        %362 = vmatpush2.msra.mxu0 0.0
        %363 = vmatprep.subr.mxu0 0.0
        %364 = vmatpush2.msra.mxu0 0.0
        %365 = vmatprep.mubr.f32.mxu0 0.0
        %366 = vmatmul.mubr.f32.gmra.mxu0 %v296
        %v367 = vpop.f32.mrf.mxu0
        %v368 = vadd.f32 0.0, %v367
        %v369 = vpop.f32.mrf.mxu0
        %370 = vmatprep.mubr.f32.mxu0 0.0
        %371 = vmatmul.mubr.f32.gmra.mxu0 %v299
        %v372 = vpop.f32.mrf.mxu0
        %v373 = vadd.f32 0.0, %v372
        %v374 = vpop.f32.mrf.mxu0
        %375 = vdwg.mxu0
        %v377 = vlaneseq
        %v378 = vshrl.u32 %v377, 7
        %v379 = vsub.s32 0, %v378
        %v380 = vrot.slane %v293, %v379
        %v383 = vsel %vm294, %v368, 0
        %v386 = vsel %vm294, %v373, 0
        %388 = vmatprep.subr.mxu0 0.0
        %389 = vmatpush1.msra.mxu0 0.0
        %390 = vmatprep.subr.mxu0 0.0
        %391 = vmatpush1.msra.mxu0 0.0
        %392 = vmatprep.subr.mxu0 0.0
        %393 = vmatpush1.msra.mxu0 0.0
        %394 = vmatprep.subr.mxu0 0.0
        %395 = vmatpush1.msra.mxu0 0.0
        %396 = vmatprep.subr.mxu0 0.0
        %397 = vmatpush1.msra.mxu0 0.0
        %398 = vmatprep.subr.mxu0 0.0
        %399 = vmatpush1.msra.mxu0 0.0
        %400 = vmatprep.subr.mxu0 0.0
        %401 = vmatpush1.msra.mxu0 0.0
        %402 = vmatprep.subr.mxu0 0.0
        %403 = vmatpush1.msra.mxu0 0.0
        %404 = vmatprep.subr.mxu0 0.0
        %405 = vmatpush1.msra.mxu0 0.0
        %406 = vmatprep.subr.mxu0 0.0
        %407 = vmatpush1.msra.mxu0 0.0
        %408 = vmatprep.subr.mxu0 0.0
        %409 = vmatpush1.msra.mxu0 0.0
        %410 = vmatprep.subr.mxu0 0.0
        %411 = vmatpush1.msra.mxu0 0.0
        %412 = vmatprep.subr.mxu0 0.0
        %413 = vmatpush1.msra.mxu0 0.0
        %414 = vmatprep.subr.mxu0 0.0
        %415 = vmatpush1.msra.mxu0 0.0
        %416 = vmatprep.subr.mxu0 0.0
        %417 = vmatpush1.msra.mxu0 %v288
        %418 = vmatprep.subr.mxu0 0.0
        %419 = vmatpush1.msra.mxu0 %v287
        %420 = vmatprep.subr.mxu0 0.0
        %421 = vmatpush2.msra.mxu0 0.0
        %422 = vmatprep.subr.mxu0 0.0
        %423 = vmatpush2.msra.mxu0 0.0
        %424 = vmatprep.subr.mxu0 0.0
        %425 = vmatpush2.msra.mxu0 0.0
        %426 = vmatprep.subr.mxu0 0.0
        %427 = vmatpush2.msra.mxu0 0.0
        %428 = vmatprep.subr.mxu0 0.0
        %429 = vmatpush2.msra.mxu0 0.0
        %430 = vmatprep.subr.mxu0 0.0
        %431 = vmatpush2.msra.mxu0 0.0
        %432 = vmatprep.subr.mxu0 0.0
        %433 = vmatpush2.msra.mxu0 0.0
        %434 = vmatprep.subr.mxu0 0.0
        %435 = vmatpush2.msra.mxu0 0.0
        %436 = vmatprep.subr.mxu0 0.0
        %437 = vmatpush2.msra.mxu0 0.0
        %438 = vmatprep.subr.mxu0 0.0
        %439 = vmatpush2.msra.mxu0 0.0
        %440 = vmatprep.subr.mxu0 0.0
        %441 = vmatpush2.msra.mxu0 0.0
        %442 = vmatprep.subr.mxu0 0.0
        %443 = vmatpush2.msra.mxu0 0.0
        %444 = vmatprep.subr.mxu0 0.0
        %445 = vmatpush2.msra.mxu0 0.0
        %446 = vmatprep.subr.mxu0 0.0
        %447 = vmatpush2.msra.mxu0 0.0
        %448 = vmatprep.subr.mxu0 0.0
        %449 = vmatpush2.msra.mxu0 0.0
        %450 = vmatprep.subr.mxu0 0.0
        %451 = vmatpush2.msra.mxu0 0.0
        %452 = vmatprep.mubr.f32.mxu0 0.0
        %453 = vmatmul.mubr.f32.gmra.mxu0 %v383
        %v454 = vpop.f32.mrf.mxu0
        %v455 = vadd.f32 %v380, %v454
        %v456 = vpop.f32.mrf.mxu0
        %457 = vmatprep.mubr.f32.mxu0 0.0
        %458 = vmatmul.mubr.f32.gmra.mxu0 %v386
        %v459 = vpop.f32.mrf.mxu0
        %v460 = vadd.f32 %v380, %v459
        %v461 = vpop.f32.mrf.mxu0
        %462 = vdwg.mxu0
        %v463 = vmax.f32 %v455, 0.0
        %v464 = vmax.f32 %v460, 0.0
        %vm465 = vcmask 261120
        %v467 = vsel %vm465, %v463, 0
        %v470 = vsel %vm465, %v464, 0
        %472 = vmatprep.subr.mxu0 0.0
        %473 = vmatpush1.msra.mxu0 0.0
        %474 = vmatprep.subr.mxu0 0.0
        %475 = vmatpush1.msra.mxu0 0.0
        %476 = vmatprep.subr.mxu0 0.0
        %477 = vmatpush1.msra.mxu0 0.0
        %478 = vmatprep.subr.mxu0 0.0
        %479 = vmatpush1.msra.mxu0 0.0
        %480 = vmatprep.subr.mxu0 0.0
        %481 = vmatpush1.msra.mxu0 0.0
        %482 = vmatprep.subr.mxu0 0.0
        %483 = vmatpush1.msra.mxu0 0.0
        %484 = vmatprep.subr.mxu0 0.0
        %485 = vmatpush1.msra.mxu0 0.0
        %486 = vmatprep.subr.mxu0 0.0
        %487 = vmatpush1.msra.mxu0 0.0
        %488 = vmatprep.subr.mxu0 0.0
        %489 = vmatpush1.msra.mxu0 0.0
        %490 = vmatprep.subr.mxu0 0.0
        %491 = vmatpush1.msra.mxu0 0.0
        %492 = vmatprep.subr.mxu0 0.0
        %493 = vmatpush1.msra.mxu0 0.0
        %494 = vmatprep.subr.mxu0 0.0
        %495 = vmatpush1.msra.mxu0 0.0
        %496 = vmatprep.subr.mxu0 0.0
        %497 = vmatpush1.msra.mxu0 %v292
        %498 = vmatprep.subr.mxu0 0.0
        %499 = vmatpush1.msra.mxu0 %v291
        %500 = vmatprep.subr.mxu0 0.0
        %501 = vmatpush1.msra.mxu0 %v290
        %502 = vmatprep.subr.mxu0 0.0
        %503 = vmatpush1.msra.mxu0 %v289
        %504 = vmatprep.subr.mxu0 0.0
        %505 = vmatpush2.msra.mxu0 0.0
        %506 = vmatprep.subr.mxu0 0.0
        %507 = vmatpush2.msra.mxu0 0.0
        %508 = vmatprep.subr.mxu0 0.0
        %509 = vmatpush2.msra.mxu0 0.0
        %510 = vmatprep.subr.mxu0 0.0
        %511 = vmatpush2.msra.mxu0 0.0
        %512 = vmatprep.subr.mxu0 0.0
        %513 = vmatpush2.msra.mxu0 0.0
        %514 = vmatprep.subr.mxu0 0.0
        %515 = vmatpush2.msra.mxu0 0.0
        %516 = vmatprep.subr.mxu0 0.0
        %517 = vmatpush2.msra.mxu0 0.0
        %518 = vmatprep.subr.mxu0 0.0
        %519 = vmatpush2.msra.mxu0 0.0
        %520 = vmatprep.subr.mxu0 0.0
        %521 = vmatpush2.msra.mxu0 0.0
        %522 = vmatprep.subr.mxu0 0.0
        %523 = vmatpush2.msra.mxu0 0.0
        %524 = vmatprep.subr.mxu0 0.0
        %525 = vmatpush2.msra.mxu0 0.0
        %526 = vmatprep.subr.mxu0 0.0
        %527 = vmatpush2.msra.mxu0 0.0
        %528 = vmatprep.subr.mxu0 0.0
        %529 = vmatpush2.msra.mxu0 0.0
        %530 = vmatprep.subr.mxu0 0.0
        %531 = vmatpush2.msra.mxu0 0.0
        %532 = vmatprep.subr.mxu0 0.0
        %533 = vmatpush2.msra.mxu0 0.0
        %534 = vmatprep.subr.mxu0 0.0
        %535 = vmatpush2.msra.mxu0 0.0
        %536 = vmatprep.mubr.f32.mxu0 0.0
        %537 = vmatmul.mubr.f32.gmra.mxu0 %v467
        %v538 = vpop.f32.mrf.mxu0
        %v539 = vadd.f32 0.0, %v538
        %v540 = vpop.f32.mrf.mxu0
        %541 = vmatprep.mubr.f32.mxu0 0.0
        %542 = vmatmul.mubr.f32.gmra.mxu0 %v470
        %v543 = vpop.f32.mrf.mxu0
        %v544 = vadd.f32 0.0, %v543
        %v545 = vpop.f32.mrf.mxu0
        %546 = vdwg.mxu0
        %547 = vrot.lane.b32.xlu0 %v380, 96
        %v548 = vpop.permute.xlu0 %547
        %550 = vmatprep.subr.mxu0 0.0
        %551 = vmatpush1.msra.mxu0 0.0
        %552 = vmatprep.subr.mxu0 0.0
        %553 = vmatpush1.msra.mxu0 0.0
        %554 = vmatprep.subr.mxu0 0.0
        %555 = vmatpush1.msra.mxu0 0.0
        %556 = vmatprep.subr.mxu0 0.0
        %557 = vmatpush1.msra.mxu0 0.0
        %558 = vmatprep.subr.mxu0 0.0
        %559 = vmatpush1.msra.mxu0 0.0
        %560 = vmatprep.subr.mxu0 0.0
        %561 = vmatpush1.msra.mxu0 0.0
        %562 = vmatprep.subr.mxu0 0.0
        %563 = vmatpush1.msra.mxu0 0.0
        %564 = vmatprep.subr.mxu0 0.0
        %565 = vmatpush1.msra.mxu0 0.0
        %566 = vmatprep.subr.mxu0 0.0
        %567 = vmatpush1.msra.mxu0 0.0
        %568 = vmatprep.subr.mxu0 0.0
        %569 = vmatpush1.msra.mxu0 0.0
        %570 = vmatprep.subr.mxu0 0.0
        %571 = vmatpush1.msra.mxu0 0.0
        %572 = vmatprep.subr.mxu0 0.0
        %573 = vmatpush1.msra.mxu0 0.0
        %574 = vmatprep.subr.mxu0 0.0
        %575 = vmatpush1.msra.mxu0 0.0
        %576 = vmatprep.subr.mxu0 0.0
        %577 = vmatpush1.msra.mxu0 0.0
        %578 = vmatprep.subr.mxu0 0.0
        %579 = vmatpush1.msra.mxu0 %v544
        %580 = vmatprep.subr.mxu0 0.0
        %581 = vmatpush1.msra.mxu0 %v539
        %582 = vmatprep.subr.mxu0 0.0
        %583 = vmatpush2.msra.mxu0 0.0
        %584 = vmatprep.subr.mxu0 0.0
        %585 = vmatpush2.msra.mxu0 0.0
        %586 = vmatprep.subr.mxu0 0.0
        %587 = vmatpush2.msra.mxu0 0.0
        %588 = vmatprep.subr.mxu0 0.0
        %589 = vmatpush2.msra.mxu0 0.0
        %590 = vmatprep.subr.mxu0 0.0
        %591 = vmatpush2.msra.mxu0 0.0
        %592 = vmatprep.subr.mxu0 0.0
        %593 = vmatpush2.msra.mxu0 0.0
        %594 = vmatprep.subr.mxu0 0.0
        %595 = vmatpush2.msra.mxu0 0.0
        %596 = vmatprep.subr.mxu0 0.0
        %597 = vmatpush2.msra.mxu0 0.0
        %598 = vmatprep.subr.mxu0 0.0
        %599 = vmatpush2.msra.mxu0 0.0
        %600 = vmatprep.subr.mxu0 0.0
        %601 = vmatpush2.msra.mxu0 0.0
        %602 = vmatprep.subr.mxu0 0.0
        %603 = vmatpush2.msra.mxu0 0.0
        %604 = vmatprep.subr.mxu0 0.0
        %605 = vmatpush2.msra.mxu0 0.0
        %606 = vmatprep.subr.mxu0 0.0
        %607 = vmatpush2.msra.mxu0 0.0
        %608 = vmatprep.subr.mxu0 0.0
        %609 = vmatpush2.msra.mxu0 0.0
        %610 = vmatprep.subr.mxu0 0.0
        %611 = vmatpush2.msra.mxu0 0.0
        %612 = vmatprep.subr.mxu0 0.0
        %613 = vmatpush2.msra.mxu0 0.0
        %614 = vmatprep.mubr.f32.mxu0 0.0
        %615 = vmatmul.mubr.f32.gmra.mxu0 %v296
        %v616 = vpop.f32.mrf.mxu0
        %v617 = vadd.f32 %v548, %v616
        %v618 = vpop.f32.mrf.mxu0
        %619 = vmatprep.mubr.f32.mxu0 0.0
        %620 = vmatmul.mubr.f32.gmra.mxu0 %v299
        %v621 = vpop.f32.mrf.mxu0
        %v622 = vadd.f32 %v548, %v621
        %v623 = vpop.f32.mrf.mxu0
        %624 = vdwg.mxu0
        %625 = vst.msk [vmem:[%s282] sm:$0xff] %vm294, %v617
        %626 = vst.msk [vmem:[%s282 + $0x8] sm:$0xff] %vm294, %v622
        %s627 = sand.u32 %s148, 1
        %s628 = scalar_lea.sflag [#allocation4], %s627
        %s629 = sand.u32 %s148, 1
        %s630 = smul.addr %s629, 16
        %s631 = scalar_lea.vmem [#allocation7], %s630
        // Predicated region
        $region49: #{tpu_custom_call.1} parent=39 // pred_check
          %p632 = pneg %p158
        $region50: #{tpu_custom_call.1} parent=39 // pred_check_branch
          %634 = sbr.rel (%p632) target = $region52
        $region51: #{tpu_custom_call.1} parent=39 // pred_region
          %s636 = ssub.s32 256, 256
          %637 = vsyncadd %s628, %s636
          %s638 = smul.addr %s25, 2
          %s639 = smul.addr %s638, 128
          %s640 = scalar_lea.hbm %s5, %s639
          %s641 = sshll.u32 %s631, 4
          %s642 = int_to_ptr.vmem [resolvable:$true] %s641
          %647 = dma.vmem_to_hbm [thread:$0]  %s642, 256, %s640, %s628, 128, 128, 8
        $region52: #{tpu_custom_call.1} parent=39 // pred_fallthru
          _
      $region40: #{tpu_custom_call.1} parent=5 // pred_fallthru
        _
      %p648 = scmp.le.s32.totalorder 2, %s20
      // Predicated region
      $region53: #{tpu_custom_call.1} parent=5 // pred_check
        %p649 = pneg %p648
      $region54: #{tpu_custom_call.1} parent=5 // pred_check_branch
        %651 = sbr.rel (%p649) target = $region56
      $region55: #{tpu_custom_call.1} parent=5 // pred_region
        %s652 = ssub.s32 %s20, 2
        // Predicated region
        $region57: #{tpu_custom_call.1} parent=55 // pred_check
          %p653 = pneg %p164
        $region58: #{tpu_custom_call.1} parent=55 // pred_check_branch
          %655 = sbr.rel (%p653) target = $region60
        $region59: #{tpu_custom_call.1} parent=55 // pred_region
          %s656 = sand.u32 %s149, 1
          %s657 = scalar_lea.sflag [#allocation4], %s656
          %s658 = sand.u32 %s149, 1
          %s659 = smul.addr %s658, 16
          %s660 = scalar_lea.vmem [#allocation7], %s659
          %661 = dma.done %s657, 256
        $region60: #{tpu_custom_call.1} parent=55 // pred_fallthru
          _
      $region56: #{tpu_custom_call.1} parent=5 // pred_fallthru
        _
    $region6: #{tpu_custom_call.1} parent=1 // loop_footer
      %s24 = sadd.s32 1, %s20
    $region7: #{tpu_custom_call.1} parent=1 // loop_footer_branch
      %19 = sbr.rel target = $region3
    $region8: #{tpu_custom_call.1} parent=1 // loop_exit
      _
    %662 = vsyncpa [#allocation3], 1
    %s663 = scalar_lea.sflag [#allocation3], 1
    %664 = vsyncpa %s663, 1
    %665 = vsyncpa [#allocation6], 1
    %s666 = scalar_lea.sflag [#allocation6], 1
    %667 = vsyncpa %s666, 1
    %668 = vsyncpa [#allocation4], 1
    %s669 = scalar_lea.sflag [#allocation4], 1
    %670 = vsyncpa %s669, 1

</llo_original>
